<compile_context>
chip_gen: v7x
topology: tpu7x:2x2x1
jax: 0.10.0
libtpu: 0.0.40
codegen_flags: <defaults>
</compile_context>

<pallas_src>
import functools

import jax
import jax.numpy as jnp
from jax.experimental import pallas as pl
from jax.experimental.pallas import tpu as pltpu

INIT_RANGE = 0.02
LAYER_NORM_EPS = 1e-12
_INV_SQRT2 = 0.7071067811865476


def _round_up(x, m):
    return ((x + m - 1) // m) * m


def _gelu_exact(x):
    # PyTorch / HF BERT "gelu": 0.5 * x * (1 + erf(x / sqrt(2)))
    return 0.5 * x * (1.0 + jax.lax.erf(x * _INV_SQRT2))


def _tpu_generation():
    try:
        kind = jax.devices()[0].device_kind.lower()
    except Exception:
        return "unknown"
    if "v5 lite" in kind or "v5e" in kind or "v5lite" in kind:
        return "v5e"
    if "v6" in kind:
        return "v6e"
    if "v7" in kind:
        return "v7x"
    return "unknown"


def _pick_i_chunk(i_pad, target):
    # Largest multiple of 128 <= target that divides i_pad (all static ints).
    if i_pad <= target:
        return i_pad
    for c in range(target, 127, -128):
        if i_pad % c == 0:
            return c
    return 128


# ------------------------- fused Pallas kernel -------------------------


def _make_mlp_stack_kernel(h_valid, h_pad, n_chunks):
    """Stacked BERT-MLP layers + final de-normalization.

    Grid = (m_tile, layer, i_chunk). The (TILE_M, H_pad) activation lives in a
    VMEM scratch across the layer/chunk axes; the intermediate->hidden output is
    accumulated into a second VMEM scratch across the chunk axis.
    """
    inv_h = 1.0 / float(h_valid)
    needs_mask = h_pad != h_valid
    last_chunk = n_chunks - 1

    def kernel(h0_ref, w1_ref, b1_ref, w2_ref, ln_ref, o_ref, h_ref, acc_ref):
        l = pl.program_id(1)
        c = pl.program_id(2)
        n_layers = pl.num_programs(1)

        # New M tile: load the (bf16) pre-layer output into the resident f32 h.
        @pl.when((l == 0) & (c == 0))
        def _():
            h_ref[...] = h0_ref[...].astype(jnp.float32)

        # New layer: zero the intermediate->hidden accumulator.
        @pl.when(c == 0)
        def _():
            acc_ref[...] = jnp.zeros_like(acc_ref)

        # One I-chunk: hidden->intermediate GEMM + GELU + intermediate->hidden GEMM.
        h_bf16 = h_ref[...].astype(jnp.bfloat16)
        t = (jnp.dot(h_bf16, w1_ref[...], preferred_element_type=jnp.float32)
             + b1_ref[...])
        t = _gelu_exact(t)
        acc_ref[...] = acc_ref[...] + jnp.dot(
            t.astype(jnp.bfloat16), w2_ref[...], preferred_element_type=jnp.float32)

        # Layer epilogue: bias + residual + LayerNorm (stats over valid cols only).
        @pl.when(c == last_chunk)
        def _():
            ln = ln_ref[...]                       # (8, H_pad) packed vectors
            b2 = ln[0:1, :]
            gamma = ln[1:2, :]
            beta = ln[2:3, :]
            y = acc_ref[...] + b2 + h_ref[...]     # dropout == identity in eval
            # Padded hidden cols of y are exactly 0 (zero-padded w2 cols, zero b2,
            # gamma-masked h), so the unmasked sum gives the exact masked mean.
            mean = jnp.sum(y, axis=-1, keepdims=True) * inv_h
            diff = y - mean
            if needs_mask:
                col = jax.lax.broadcasted_iota(jnp.int32, (1, h_pad), 1)
                diff_m = jnp.where(col < h_valid, diff, 0.0)
            else:
                diff_m = diff
            var = jnp.sum(diff_m * diff_m, axis=-1, keepdims=True) * inv_h
            y_hat = diff * jax.lax.rsqrt(var + LAYER_NORM_EPS)
            # Padded gamma == 0 -> padded columns of h stay exactly 0.
            h_ref[...] = y_hat * gamma + beta

        # Stack epilogue: fused (h - beta_last) * (1 / gamma_last).
        @pl.when((c == last_chunk) & (l == n_layers - 1))
        def _():
            ln = ln_ref[...]
            beta = ln[2:3, :]
            inv_g = ln[3:4, :]
            o_ref[...] = (h_ref[...] - beta) * inv_g

    return kernel


# ------------------------- parameter init (init_bert_weights) -------------------------


def init_params(key, input_size, hidden_size, intermediate_size, num_layers,
                weight_dtype=jnp.bfloat16):
    assert num_layers >= 1
    h_pad = _round_up(hidden_size, 128)
    i_pad = _round_up(intermediate_size, 128)

    def pad2(w, rows, cols):
        return jnp.pad(w, ((0, rows - w.shape[0]), (0, cols - w.shape[1])))

    keys = jax.random.split(key, 1 + 2 * num_layers)

    # pre_layer Linear: weight ~ N(0, 0.02), bias = 0. Columns zero-padded to H_pad.
    pre_w = jax.random.normal(keys[0], (input_size, hidden_size), jnp.float32) * INIT_RANGE
    pre_w = pad2(pre_w, input_size, h_pad).astype(weight_dtype)
    pre_b = jnp.zeros((1, h_pad), jnp.float32)

    w1_list, w2_list = [], []
    for l in range(num_layers):
        w1 = jax.random.normal(keys[1 + 2 * l], (hidden_size, intermediate_size),
                               jnp.float32) * INIT_RANGE
        w2 = jax.random.normal(keys[2 + 2 * l], (intermediate_size, hidden_size),
                               jnp.float32) * INIT_RANGE
        w1_list.append(pad2(w1, h_pad, i_pad).astype(weight_dtype))
        w2_list.append(pad2(w2, i_pad, h_pad).astype(weight_dtype))

    # LayerNorm: gamma = 1 / beta = 0 on valid columns (init_bert_weights). gamma is
    # padded with 0 so padded hidden columns of the residual stream stay exactly 0.
    col_valid = (jnp.arange(h_pad) < hidden_size).astype(jnp.float32)
    gamma = jnp.broadcast_to(col_valid[None, :], (num_layers, h_pad))
    beta = jnp.zeros((num_layers, h_pad), jnp.float32)
    b2 = jnp.zeros((num_layers, h_pad), jnp.float32)
    # Precomputed 1/gamma (0 on padded cols; assumes no zero entries on valid cols).
    inv_gamma = jnp.where(col_valid[None, :] > 0,
                          1.0 / jnp.where(col_valid[None, :] > 0, gamma, 1.0), 0.0)

    # Pack per-layer (1, H_pad) vectors into one (L, 8, H_pad) tensor -> 1 DMA/layer.
    ln_pack = jnp.zeros((num_layers, 8, h_pad), jnp.float32)
    ln_pack = ln_pack.at[:, 0, :].set(b2)
    ln_pack = ln_pack.at[:, 1, :].set(gamma)
    ln_pack = ln_pack.at[:, 2, :].set(beta)
    ln_pack = ln_pack.at[:, 3, :].set(inv_gamma)

    params = {
        "pre_w": pre_w,                                        # (D, H_pad)        bf16
        "pre_b": pre_b,                                        # (1, H_pad)        f32
        "w1": jnp.stack(w1_list),                              # (L, H_pad, I_pad) bf16
        "b1": jnp.zeros((num_layers, 1, i_pad), jnp.float32),  # (L, 1, I_pad)     f32
        "w2": jnp.stack(w2_list),                              # (L, I_pad, H_pad) bf16
        "ln_pack": ln_pack,                                    # (L, 8, H_pad)     f32
    }
    config = {
        "input_size": input_size,
        "hidden_size": hidden_size,
        "intermediate_size": intermediate_size,
        "num_layers": num_layers,
    }
    return params, config


# ------------------------- forward wrapper -------------------------


@functools.partial(jax.jit, static_argnames=("hidden_size", "tile_m"))
def mlp_forward(params, x, *, hidden_size, tile_m=None):
    # x: (B, S, input_size) -> (B, S, hidden_size)
    B, S, D = x.shape
    H = hidden_size
    L, h_pad, i_pad = params["w1"].shape       # static Python ints (shapes)

    gen = _tpu_generation()
    if tile_m is None:
        # Roofline-driven per generation: v6e needs ~650 rows/weight-byte, v7x ~311.
        tile_m = {"v5e": 256, "v6e": 768, "v7x": 512}.get(gen, 256)
    i_chunk = _pick_i_chunk(i_pad, target=2048 if gen == "v5e" else 1024)
    n_chunks = i_pad // i_chunk

    M = B * S
    if M <= tile_m:
        if gen == "v7x" and M > 8:
            tm = _round_up(-(-M // 2), 8)      # >= 2 tiles: use both TensorCores
        else:
            tm = _round_up(M, 8)
    else:
        tm = tile_m
    m_pad = _round_up(M, tm)
    n_m_tiles = m_pad // tm

    # Pre-layer Linear hoisted out of the fused kernel (plain XLA GEMM): removes the
    # (D, H) weight from VMEM residency and makes the kernel's activation input bf16.
    x2 = x.reshape(M, D).astype(jnp.bfloat16)
    h0 = jnp.dot(x2, params["pre_w"], preferred_element_type=jnp.float32) + params["pre_b"]
    h0 = jnp.pad(h0.astype(jnp.bfloat16), ((0, m_pad - M), (0, 0)))

    kernel = _make_mlp_stack_kernel(H, h_pad, n_chunks)

    in_specs = [
        pl.BlockSpec((tm, h_pad), lambda i, l, c: (i, 0)),                # h0 (resident per i)
        pl.BlockSpec((None, h_pad, i_chunk), lambda i, l, c: (l, 0, c)),  # w1 chunk
        pl.BlockSpec((None, 1, i_chunk), lambda i, l, c: (l, 0, c)),      # b1 chunk
        pl.BlockSpec((None, i_chunk, h_pad), lambda i, l, c: (l, c, 0)),  # w2 chunk
        pl.BlockSpec((None, 8, h_pad), lambda i, l, c: (l, 0, 0)),        # packed LN vectors
    ]
    out_spec = pl.BlockSpec((tm, h_pad), lambda i, l, c: (i, 0))

    # VMEM budget: double-buffered operands + resident scratch + live intermediates.
    vmem_est = (
        2 * tm * h_pad * 2                      # h0 tile (bf16)
        + 2 * 2 * h_pad * i_chunk * 2           # w1 + w2 chunks (bf16)
        + 2 * 8 * i_chunk * 4                   # b1 chunk (sublane-padded)
        + 2 * 8 * h_pad * 4                     # packed LN vectors
        + 2 * tm * h_pad * 4                    # output tile
        + 2 * tm * h_pad * 4                    # h + acc scratch
        + tm * i_chunk * 6                      # live intermediate (f32 + bf16)
    )
    vmem_cap = (48 << 20) if gen in ("v7x", "unknown") else (100 << 20)
    vmem_limit = int(min(max(2 * vmem_est, 16 << 20), vmem_cap))

    cost = pl.CostEstimate(
        flops=int(L * 4 * m_pad * h_pad * i_pad),
        transcendentals=int(L * m_pad * i_pad),
        bytes_accessed=int(
            m_pad * h_pad * 2 + m_pad * h_pad * 4
            + n_m_tiles * L * (2 * 2 * h_pad * i_pad + i_pad * 4 + 8 * h_pad * 4)),
    )

    out = pl.pallas_call(
        kernel,
        out_shape=jax.ShapeDtypeStruct((m_pad, h_pad), jnp.float32),
        grid_spec=pltpu.PrefetchScalarGridSpec(
            num_scalar_prefetch=0,
            grid=(n_m_tiles, L, n_chunks),      # layer / chunk axes innermost
            in_specs=in_specs,
            out_specs=out_spec,
            scratch_shapes=[pltpu.VMEM((tm, h_pad), jnp.float32),   # resident hidden h
                            pltpu.VMEM((tm, h_pad), jnp.float32)],  # per-layer accumulator
        ),
        compiler_params=pltpu.CompilerParams(
            dimension_semantics=("parallel", "arbitrary", "arbitrary"),
            vmem_limit_bytes=vmem_limit,
        ),
        cost_estimate=cost,
    )(h0, params["w1"], params["b1"], params["w2"], params["ln_pack"])
    return out[:M, :H].reshape(B, S, H)


# ------------------------- pure-JAX reference (for correctness check) -------------------------


def _reference_forward(params, x, hidden_size, intermediate_size):
    B, S, D = x.shape
    H = hidden_size
    I = intermediate_size
    L = params["w1"].shape[0]
    hp = jax.lax.Precision.HIGHEST

    h = x.reshape(B * S, D).astype(jnp.float32)
    h = jnp.dot(h, params["pre_w"][:, :H].astype(jnp.float32), precision=hp) \
        + params["pre_b"][:, :H]
    for l in range(L):
        w1 = params["w1"][l, :H, :I].astype(jnp.float32)
        b1 = params["b1"][l, :, :I]
        w2 = params["w2"][l, :I, :H].astype(jnp.float32)
        b2 = params["ln_pack"][l, 0:1, :H]
        g = params["ln_pack"][l, 1:2, :H]
        bta = params["ln_pack"][l, 2:3, :H]
        t = _gelu_exact(jnp.dot(h, w1, precision=hp) + b1)
        y = jnp.dot(t, w2, precision=hp) + b2 + h
        mean = jnp.mean(y, axis=-1, keepdims=True)
        var = jnp.mean((y - mean) ** 2, axis=-1, keepdims=True)
        h = (y - mean) * jax.lax.rsqrt(var + LAYER_NORM_EPS) * g + bta
    g_last = params["ln_pack"][L - 1, 1:2, :H]
    b_last = params["ln_pack"][L - 1, 2:3, :H]
    return ((h - b_last) / g_last).reshape(B, S, H)


if __name__ == "__main__":
    # Small, module-consistent shapes (feature dims are padded to 128 internally).
    batch, seq = 2, 8
    input_size = 16
    hidden_size = 32
    intermediate_size = 64
    num_layers = 2

    key = jax.random.PRNGKey(0)
    k_param, k_x = jax.random.split(key)
    params, cfg = init_params(k_param, input_size, hidden_size, intermediate_size, num_layers)
    x = jax.random.normal(k_x, (batch, seq, input_size), jnp.float32)

    out = mlp_forward(params, x, hidden_size=hidden_size)
    jax.block_until_ready(out)
    assert out.shape == (batch, seq, hidden_size)

    ref = _reference_forward(params, x, hidden_size, intermediate_size)
    max_err = float(jnp.max(jnp.abs(out - ref)))
    assert max_err < 5e-2, f"mismatch vs reference: max_err={max_err}"

    print("KERNEL_OK")
</pallas_src>

<mosaic_0001>
module attributes {stable_mosaic.version = 11 : i64} {
  func.func @kernel(%arg0: i32, %arg1: i32, %arg2: i32, %arg3: memref<16x128xbf16, #tpu.memory_space<vmem>>, %arg4: memref<1x128x128xbf16, #tpu.memory_space<vmem>>, %arg5: memref<1x1x128xf32, #tpu.memory_space<vmem>>, %arg6: memref<1x128x128xbf16, #tpu.memory_space<vmem>>, %arg7: memref<1x8x128xf32, #tpu.memory_space<vmem>>, %arg8: memref<16x128xf32, #tpu.memory_space<vmem>>, %arg9: memref<16x128xf32, #tpu.memory_space<vmem>>, %arg10: memref<16x128xf32, #tpu.memory_space<vmem>>) attributes {dimension_semantics = [#tpu.dimension_semantics<parallel>, #tpu.dimension_semantics<arbitrary>, #tpu.dimension_semantics<arbitrary>], iteration_bounds = array<i64: 1, 2, 1>, scalar_prefetch = 0 : i64, scratch_operands = 2 : i64, tpu.core_type = #tpu.core_type<tc>, window_params = [{transform_indices = @transform_0, window_bounds = array<i64: 16, 128>}, {transform_indices = @transform_1, window_bounds = array<i64: 1, 128, 128>}, {transform_indices = @transform_2, window_bounds = array<i64: 1, 1, 128>}, {transform_indices = @transform_3, window_bounds = array<i64: 1, 128, 128>}, {transform_indices = @transform_4, window_bounds = array<i64: 1, 8, 128>}, {transform_indices = @transform_5, window_bounds = array<i64: 16, 128>}]} {
    %c0_i32 = arith.constant 0 : i32
    %0 = arith.cmpi eq, %arg1, %c0_i32 : i32
    %c0_i32_0 = arith.constant 0 : i32
    %1 = arith.cmpi eq, %arg2, %c0_i32_0 : i32
    %2 = arith.andi %0, %1 : i1
    %3 = arith.extui %2 : i1 to i32
    %c0_i32_1 = arith.constant 0 : i32
    %4 = arith.cmpi ne, %3, %c0_i32_1 : i32
    scf.if %4 {
      %c0_26 = arith.constant 0 : index
      %c0_27 = arith.constant 0 : index
      %40 = vector.load %arg3[%c0_26, %c0_27] : memref<16x128xbf16, #tpu.memory_space<vmem>>, vector<16x128xbf16>
      %41 = arith.extf %40 : vector<16x128xbf16> to vector<16x128xf32>
      %c0_28 = arith.constant 0 : index
      %c0_29 = arith.constant 0 : index
      %42 = vector.load %arg9[%c0_28, %c0_29] : memref<16x128xf32, #tpu.memory_space<vmem>>, vector<16x128xf32>
      tpu.vector_store %arg9[%c0_28, %c0_29], %41 {strides = array<i32>} : memref<16x128xf32, #tpu.memory_space<vmem>>, vector<16x128xf32>,
    } else {
    }
    %c0_i32_2 = arith.constant 0 : i32
    %5 = arith.cmpi eq, %arg2, %c0_i32_2 : i32
    %6 = arith.extui %5 : i1 to i32
    %c0_i32_3 = arith.constant 0 : i32
    %7 = arith.cmpi ne, %6, %c0_i32_3 : i32
    scf.if %7 {
      %cst_26 = arith.constant 0.000000e+00 : f32
      %40 = vector.broadcast %cst_26 : f32 to vector<16x128xf32>
      %c0_27 = arith.constant 0 : index
      %c0_28 = arith.constant 0 : index
      %41 = vector.load %arg10[%c0_27, %c0_28] : memref<16x128xf32, #tpu.memory_space<vmem>>, vector<16x128xf32>
      tpu.vector_store %arg10[%c0_27, %c0_28], %40 {strides = array<i32>} : memref<16x128xf32, #tpu.memory_space<vmem>>, vector<16x128xf32>,
    } else {
    }
    %c0 = arith.constant 0 : index
    %c0_4 = arith.constant 0 : index
    %8 = vector.load %arg9[%c0, %c0_4] : memref<16x128xf32, #tpu.memory_space<vmem>>, vector<16x128xf32>
    %9 = arith.truncf %8 : vector<16x128xf32> to vector<16x128xbf16>
    %c0_5 = arith.constant 0 : index
    %c0_6 = arith.constant 0 : index
    %c0_7 = arith.constant 0 : index
    %10 = vector.load %arg4[%c0_5, %c0_6, %c0_7] : memref<1x128x128xbf16, #tpu.memory_space<vmem>>, vector<1x128x128xbf16>
    %11 = vector.shape_cast %10 : vector<1x128x128xbf16> to vector<128x128xbf16>
    %cst = arith.constant dense<0.000000e+00> : vector<16x128xf32>
    %12 = tpu.matmul %9, %11, %cst {dimension_numbers = #tpu.dot_dimension_numbers<[1], [0], [0], [1], [0, 0, 1, 1], [], []>} : vector<16x128xbf16>, vector<128x128xbf16>, vector<16x128xf32> -> vector<16x128xf32>
    %c0_8 = arith.constant 0 : index
    %c0_9 = arith.constant 0 : index
    %c0_10 = arith.constant 0 : index
    %13 = vector.load %arg5[%c0_8, %c0_9, %c0_10] : memref<1x1x128xf32, #tpu.memory_space<vmem>>, vector<1x1x128xf32>
    %14 = vector.shape_cast %13 : vector<1x1x128xf32> to vector<1x128xf32>
    %15 = vector.broadcast %14 : vector<1x128xf32> to vector<16x128xf32>
    %16 = arith.addf %12, %15 : vector<16x128xf32>
    %cst_11 = arith.constant 5.000000e-01 : f32
    %17 = vector.broadcast %cst_11 : f32 to vector<16x128xf32>
    %18 = arith.mulf %17, %16 : vector<16x128xf32>
    %cst_12 = arith.constant 0.707106769 : f32
    %19 = vector.broadcast %cst_12 : f32 to vector<16x128xf32>
    %20 = arith.mulf %16, %19 : vector<16x128xf32>
    %21 = math.erf %20 : vector<16x128xf32>
    %cst_13 = arith.constant 1.000000e+00 : f32
    %22 = vector.broadcast %cst_13 : f32 to vector<16x128xf32>
    %23 = arith.addf %22, %21 : vector<16x128xf32>
    %24 = arith.mulf %18, %23 : vector<16x128xf32>
    %c0_14 = arith.constant 0 : index
    %c0_15 = arith.constant 0 : index
    %25 = vector.load %arg10[%c0_14, %c0_15] : memref<16x128xf32, #tpu.memory_space<vmem>>, vector<16x128xf32>
    %26 = arith.truncf %24 : vector<16x128xf32> to vector<16x128xbf16>
    %c0_16 = arith.constant 0 : index
    %c0_17 = arith.constant 0 : index
    %c0_18 = arith.constant 0 : index
    %27 = vector.load %arg6[%c0_16, %c0_17, %c0_18] : memref<1x128x128xbf16, #tpu.memory_space<vmem>>, vector<1x128x128xbf16>
    %28 = vector.shape_cast %27 : vector<1x128x128xbf16> to vector<128x128xbf16>
    %cst_19 = arith.constant dense<0.000000e+00> : vector<16x128xf32>
    %29 = tpu.matmul %26, %28, %cst_19 {dimension_numbers = #tpu.dot_dimension_numbers<[1], [0], [0], [1], [0, 0, 1, 1], [], []>} : vector<16x128xbf16>, vector<128x128xbf16>, vector<16x128xf32> -> vector<16x128xf32>
    %30 = arith.addf %25, %29 : vector<16x128xf32>
    %c0_20 = arith.constant 0 : index
    %c0_21 = arith.constant 0 : index
    %31 = vector.load %arg10[%c0_20, %c0_21] : memref<16x128xf32, #tpu.memory_space<vmem>>, vector<16x128xf32>
    tpu.vector_store %arg10[%c0_20, %c0_21], %30 {strides = array<i32>} : memref<16x128xf32, #tpu.memory_space<vmem>>, vector<16x128xf32>,
    %c0_i32_22 = arith.constant 0 : i32
    %32 = arith.cmpi eq, %arg2, %c0_i32_22 : i32
    %33 = arith.extui %32 : i1 to i32
    %c0_i32_23 = arith.constant 0 : i32
    %34 = arith.cmpi ne, %33, %c0_i32_23 : i32
    scf.if %34 {
      %c0_26 = arith.constant 0 : index
      %c0_27 = arith.constant 0 : index
      %c0_28 = arith.constant 0 : index
      %40 = vector.load %arg7[%c0_26, %c0_27, %c0_28] : memref<1x8x128xf32, #tpu.memory_space<vmem>>, vector<1x8x128xf32>
      %41 = vector.shape_cast %40 : vector<1x8x128xf32> to vector<8x128xf32>
      %42 = vector.extract_strided_slice %41 {offsets = [0, 0], sizes = [1, 128], strides = [1, 1]} : vector<8x128xf32> to vector<1x128xf32>
      %43 = vector.extract_strided_slice %41 {offsets = [1, 0], sizes = [1, 128], strides = [1, 1]} : vector<8x128xf32> to vector<1x128xf32>
      %44 = vector.extract_strided_slice %41 {offsets = [2, 0], sizes = [1, 128], strides = [1, 1]} : vector<8x128xf32> to vector<1x128xf32>
      %c0_29 = arith.constant 0 : index
      %c0_30 = arith.constant 0 : index
      %45 = vector.load %arg10[%c0_29, %c0_30] : memref<16x128xf32, #tpu.memory_space<vmem>>, vector<16x128xf32>
      %46 = vector.broadcast %42 : vector<1x128xf32> to vector<16x128xf32>
      %47 = arith.addf %45, %46 : vector<16x128xf32>
      %c0_31 = arith.constant 0 : index
      %c0_32 = arith.constant 0 : index
      %48 = vector.load %arg9[%c0_31, %c0_32] : memref<16x128xf32, #tpu.memory_space<vmem>>, vector<16x128xf32>
      %49 = arith.addf %47, %48 : vector<16x128xf32>
      %cst_33 = arith.constant dense<0.000000e+00> : vector<16xf32>
      %50 = vector.multi_reduction <add>, %49, %cst_33 [1] : vector<16x128xf32> to vector<16xf32>
      %51 = vector.shape_cast %50 : vector<16xf32> to vector<16x1xf32>
      %cst_34 = arith.constant 3.125000e-02 : f32
      %52 = vector.broadcast %cst_34 : f32 to vector<16x1xf32>
      %53 = arith.mulf %51, %52 : vector<16x1xf32>
      %54 = vector.broadcast %53 : vector<16x1xf32> to vector<16x128xf32>
      %55 = arith.subf %49, %54 : vector<16x128xf32>
      %56 = tpu.iota {dimensions = array<i32: 1>} : vector<1x128xi32>
      %c32_i32 = arith.constant 32 : i32
      %57 = vector.broadcast %c32_i32 : i32 to vector<1x128xi32>
      %58 = arith.cmpi slt, %56, %57 : vector<1x128xi32>
      %cst_35 = arith.constant 0.000000e+00 : f32
      %59 = vector.shape_cast %58 : vector<1x128xi1> to vector<1x128xi1>
      %60 = vector.broadcast %59 : vector<1x128xi1> to vector<16x128xi1>
      %61 = vector.broadcast %cst_35 : f32 to vector<16x128xf32>
      %62 = arith.select %60, %55, %61 : vector<16x128xi1>, vector<16x128xf32>
      %63 = arith.mulf %62, %62 : vector<16x128xf32>
      %cst_36 = arith.constant dense<0.000000e+00> : vector<16xf32>
      %64 = vector.multi_reduction <add>, %63, %cst_36 [1] : vector<16x128xf32> to vector<16xf32>
      %65 = vector.shape_cast %64 : vector<16xf32> to vector<16x1xf32>
      %cst_37 = arith.constant 3.125000e-02 : f32
      %66 = vector.broadcast %cst_37 : f32 to vector<16x1xf32>
      %67 = arith.mulf %65, %66 : vector<16x1xf32>
      %cst_38 = arith.constant 9.99999996E-13 : f32
      %68 = vector.broadcast %cst_38 : f32 to vector<16x1xf32>
      %69 = arith.addf %67, %68 : vector<16x1xf32>
      %70 = math.rsqrt %69 : vector<16x1xf32>
      %71 = vector.broadcast %70 : vector<16x1xf32> to vector<16x128xf32>
      %72 = arith.mulf %55, %71 : vector<16x128xf32>
      %73 = vector.broadcast %43 : vector<1x128xf32> to vector<16x128xf32>
      %74 = arith.mulf %72, %73 : vector<16x128xf32>
      %75 = vector.broadcast %44 : vector<1x128xf32> to vector<16x128xf32>
      %76 = arith.addf %74, %75 : vector<16x128xf32>
      %c0_39 = arith.constant 0 : index
      %c0_40 = arith.constant 0 : index
      %77 = vector.load %arg9[%c0_39, %c0_40] : memref<16x128xf32, #tpu.memory_space<vmem>>, vector<16x128xf32>
      tpu.vector_store %arg9[%c0_39, %c0_40], %76 {strides = array<i32>} : memref<16x128xf32, #tpu.memory_space<vmem>>, vector<16x128xf32>,
    } else {
    }
    %c0_i32_24 = arith.constant 0 : i32
    %35 = arith.cmpi eq, %arg2, %c0_i32_24 : i32
    %c1_i32 = arith.constant 1 : i32
    %36 = arith.cmpi eq, %arg1, %c1_i32 : i32
    %37 = arith.andi %35, %36 : i1
    %38 = arith.extui %37 : i1 to i32
    %c0_i32_25 = arith.constant 0 : i32
    %39 = arith.cmpi ne, %38, %c0_i32_25 : i32
    scf.if %39 {
      %c0_26 = arith.constant 0 : index
      %c0_27 = arith.constant 0 : index
      %c0_28 = arith.constant 0 : index
      %40 = vector.load %arg7[%c0_26, %c0_27, %c0_28] : memref<1x8x128xf32, #tpu.memory_space<vmem>>, vector<1x8x128xf32>
      %41 = vector.shape_cast %40 : vector<1x8x128xf32> to vector<8x128xf32>
      %42 = vector.extract_strided_slice %41 {offsets = [2, 0], sizes = [1, 128], strides = [1, 1]} : vector<8x128xf32> to vector<1x128xf32>
      %43 = vector.extract_strided_slice %41 {offsets = [3, 0], sizes = [1, 128], strides = [1, 1]} : vector<8x128xf32> to vector<1x128xf32>
      %c0_29 = arith.constant 0 : index
      %c0_30 = arith.constant 0 : index
      %44 = vector.load %arg9[%c0_29, %c0_30] : memref<16x128xf32, #tpu.memory_space<vmem>>, vector<16x128xf32>
      %45 = vector.broadcast %42 : vector<1x128xf32> to vector<16x128xf32>
      %46 = arith.subf %44, %45 : vector<16x128xf32>
      %47 = vector.broadcast %43 : vector<1x128xf32> to vector<16x128xf32>
      %48 = arith.mulf %46, %47 : vector<16x128xf32>
      %c0_31 = arith.constant 0 : index
      %c0_32 = arith.constant 0 : index
      %49 = vector.load %arg8[%c0_31, %c0_32] : memref<16x128xf32, #tpu.memory_space<vmem>>, vector<16x128xf32>
      tpu.vector_store %arg8[%c0_31, %c0_32], %48 {strides = array<i32>} : memref<16x128xf32, #tpu.memory_space<vmem>>, vector<16x128xf32>,
    } else {
    }
    return
  }
  func.func @transform_0(%arg0: i32, %arg1: i32, %arg2: i32) -> (i32, i32) {
    %c0_i32 = arith.constant 0 : i32
    %c0_i32_0 = arith.constant 0 : i32
    return %arg0, %c0_i32 : i32, i32
  }
  func.func @transform_1(%arg0: i32, %arg1: i32, %arg2: i32) -> (i32, i32, i32) {
    %c0_i32 = arith.constant 0 : i32
    %c0_i32_0 = arith.constant 0 : i32
    return %arg1, %c0_i32, %arg2 : i32, i32, i32
  }
  func.func @transform_2(%arg0: i32, %arg1: i32, %arg2: i32) -> (i32, i32, i32) {
    %c0_i32 = arith.constant 0 : i32
    %c0_i32_0 = arith.constant 0 : i32
    return %arg1, %c0_i32, %arg2 : i32, i32, i32
  }
  func.func @transform_3(%arg0: i32, %arg1: i32, %arg2: i32) -> (i32, i32, i32) {
    %c0_i32 = arith.constant 0 : i32
    %c0_i32_0 = arith.constant 0 : i32
    return %arg1, %arg2, %c0_i32 : i32, i32, i32
  }
  func.func @transform_4(%arg0: i32, %arg1: i32, %arg2: i32) -> (i32, i32, i32) {
    %c0_i32 = arith.constant 0 : i32
    %c0_i32_0 = arith.constant 0 : i32
    %c0_i32_1 = arith.constant 0 : i32
    return %arg1, %c0_i32, %c0_i32_0 : i32, i32, i32
  }
  func.func @transform_5(%arg0: i32, %arg1: i32, %arg2: i32) -> (i32, i32) {
    %c0_i32 = arith.constant 0 : i32
    %c0_i32_0 = arith.constant 0 : i32
    return %arg0, %c0_i32 : i32, i32
  }
}

</mosaic_0001>

<llo_original>
// kernel: mlp_forward.1
$region0: #{mlp_forward.1}
  #allocation0 [shape = 'u32[]', space=smem, size = 0x4, offset = 0x4, fixed_abs, tag = 'smem constant byte address 0x4 - core index']
  #allocation1 [shape = 'u32[144,128]{1,0:T(1,128)}', space=vmem, size = 0x12000, scoped, tag = 'internal scratch']
  #allocation2 [shape = 'f32[16,128]{1,0:T(8,128)}', space=vmem, size = 0x2000, scoped, tag = 'scratch operand']
  #allocation3 [shape = 'f32[16,128]{1,0:T(8,128)}', space=vmem, size = 0x2000, scoped, tag = 'scratch operand']
  %s0 = inlined_call_operand.vmem [shape: bf16[16,128], index: 0, kind: input, shape index: {}]
  %s1 = inlined_call_operand.hbm [shape: bf16[2,128,128], index: 1, kind: input, shape index: {}]
  %s2 = inlined_call_operand.vmem [shape: f32[2,1,128], index: 2, kind: input, shape index: {}]
  %s3 = inlined_call_operand.hbm [shape: bf16[2,128,128], index: 3, kind: input, shape index: {}]
  %s4 = inlined_call_operand.vmem [shape: f32[2,8,128], index: 4, kind: input, shape index: {}]
  %s5 = inlined_call_operand.vmem [shape: f32[16,128], index: 5, kind: output, shape index: {}]
  %s6 = sld [smem:[#allocation0]]
  $region77: #{mlp_forward.1} parent=0
    _
  %s8 = ssub.s32 1, %s6
  %s9 = scalar_select 0, %s8, %s6
  $region1: #{mlp_forward.1} parent=0
    #allocation4 [shape = 'u8[65536]{0}', space=vmem, size = 0x10000, scoped, tag = 'input window, operand 1']
    #allocation5 [shape = 's32[2]{0}', space=sflag, size = 0x8, scoped, tag = 'scoped memory for mlp_forward.1']
    #allocation6 [shape = 'u8[65536]{0}', space=vmem, size = 0x10000, scoped, tag = 'input window, operand 3']
    #allocation7 [shape = 's32[2]{0}', space=sflag, size = 0x8, scoped, tag = 'scoped memory for mlp_forward.1']
    %10 = vsyncpa [#allocation5], 0
    %s11 = scalar_lea.sflag [#allocation5], 1
    %12 = vsyncpa %s11, 0
    %13 = vsyncpa [#allocation7], 0
    %s14 = scalar_lea.sflag [#allocation7], 1
    %15 = vsyncpa %s14, 0
    loop: start=0, step=1, limit=4
    $region2: #{mlp_forward.1} parent=1 // loop_pre_header
      _
    $region3: #{mlp_forward.1} parent=1 // loop_header
      %s17 = sphi 0, %s21
      %p18 = scmp.ge.s32.totalorder %s17, 4
      %s24 = sphi 0, %s43
      %s25 = sphi 0, %s39
      %s26 = sphi 0, %s35
      %s27 = sphi 0, %s24
      %s28 = sphi 0, %s25
      %s29 = sphi 0, %s26
      %s30 = sphi 0, %s27
      %s31 = sphi 0, %s28
      %s32 = sphi 0, %s29
      %s46 = sphi 0, %s48
      %s49 = sphi 0, %s46
      %s50 = sphi 0, %s49
      %s66 = sphi 0, %s50
      %s74 = sphi 0, %s76
      %s77 = sphi 0, %s74
      %s78 = sphi 0, %s77
      %s94 = sphi 0, %s78
      %s102 = sphi 0, %s104
      %s105 = sphi 0, %s102
      %s106 = sphi 0, %s105
      %s122 = sphi 0, %s106
      %s130 = sphi 0, %s132
      %s133 = sphi 0, %s130
      %s134 = sphi 0, %s133
      %s150 = sphi 0, %s134
      %s156 = sphi 0, %s158
      %s159 = sphi 0, %s156
      %s160 = sphi 0, %s159
      %s176 = sphi 0, %s160
      %s182 = sphi 0, %s184
      %s185 = sphi 0, %s182
      %s186 = sphi 0, %s185
      %s202 = sphi 0, %s186
    $region4: #{mlp_forward.1} parent=1 // loop_header_branch
      %20 = sbr.rel (%p18) target = $region8
    $region5: #{mlp_forward.1} parent=1 // loop_body
      %s22 = ssub.s32 %s17, 1
      %s23 = ssub.s32 %s17, 2
      %s33 = sadd.s32 1, %s26
      %p34 = scmp.ge.s32.totalorder %s33, 1
      %s35 = scalar_select %p34, 0, %s33
      %s36 = sadd.s32 1, %s25
      %s37 = scalar_select %p34, %s36, %s25
      %p38 = scmp.ge.s32.totalorder %s37, 2
      %s39 = scalar_select %p38, 0, %s37
      %s40 = sadd.s32 1, %s24
      %s41 = scalar_select %p38, %s40, %s24
      %p42 = scmp.ge.s32.totalorder %s41, 1
      %s43 = scalar_select %p42, 0, %s41
      %s44 = ssub.s32 %s24, %s43
      %p45 = scmp.eq.s32.totalorder %s44, 0
      %s47 = sadd.s32 %s46, 1
      %s48 = scalar_select %p45, %s46, %s47
      %p51 = pneg %p45
      %p52 = scmp.eq.s32.totalorder %s17, 1
      %p53 = por %p51, %p52
      %p54 = scmp.ne.s32.totalorder %s46, %s49
      %p55 = scmp.eq.s32.totalorder %s17, 0
      %p56 = por %p54, %p55
      %p57 = scmp.ne.s32.totalorder %s46, %s49
      %p58 = scmp.eq.s32.totalorder %s22, 1
      %p59 = por %p57, %p58
      %p60 = scmp.ne.s32.totalorder %s49, %s50
      %p61 = scmp.eq.s32.totalorder %s22, 0
      %p62 = por %p60, %p61
      %p63 = scmp.ne.s32.totalorder %s49, %s50
      %p64 = scmp.eq.s32.totalorder %s23, 1
      %p65 = por %p63, %p64
      %p67 = scmp.ne.s32.totalorder %s50, %s66
      %p68 = scmp.eq.s32.totalorder %s23, 0
      %p69 = por %p67, %p68
      %s70 = ssub.s32 %s25, %s39
      %s71 = ssub.s32 %s26, %s35
      %s72 = sor.u32 %s70, %s71
      %p73 = scmp.eq.s32.totalorder %s72, 0
      %s75 = sadd.s32 %s74, 1
      %s76 = scalar_select %p73, %s74, %s75
      %p79 = pneg %p73
      %p80 = scmp.eq.s32.totalorder %s17, 1
      %p81 = por %p79, %p80
      %p82 = scmp.ne.s32.totalorder %s74, %s77
      %p83 = scmp.eq.s32.totalorder %s17, 0
      %p84 = por %p82, %p83
      %p85 = scmp.ne.s32.totalorder %s74, %s77
      %p86 = scmp.eq.s32.totalorder %s22, 1
      %p87 = por %p85, %p86
      %p88 = scmp.ne.s32.totalorder %s77, %s78
      %p89 = scmp.eq.s32.totalorder %s22, 0
      %p90 = por %p88, %p89
      %p91 = scmp.ne.s32.totalorder %s77, %s78
      %p92 = scmp.eq.s32.totalorder %s23, 1
      %p93 = por %p91, %p92
      %p95 = scmp.ne.s32.totalorder %s78, %s94
      %p96 = scmp.eq.s32.totalorder %s23, 0
      %p97 = por %p95, %p96
      %s98 = ssub.s32 %s25, %s39
      %s99 = ssub.s32 %s26, %s35
      %s100 = sor.u32 %s98, %s99
      %p101 = scmp.eq.s32.totalorder %s100, 0
      %s103 = sadd.s32 %s102, 1
      %s104 = scalar_select %p101, %s102, %s103
      %p107 = pneg %p101
      %p108 = scmp.eq.s32.totalorder %s17, 1
      %p109 = por %p107, %p108
      %p110 = scmp.ne.s32.totalorder %s102, %s105
      %p111 = scmp.eq.s32.totalorder %s17, 0
      %p112 = por %p110, %p111
      %p113 = scmp.ne.s32.totalorder %s102, %s105
      %p114 = scmp.eq.s32.totalorder %s22, 1
      %p115 = por %p113, %p114
      %p116 = scmp.ne.s32.totalorder %s105, %s106
      %p117 = scmp.eq.s32.totalorder %s22, 0
      %p118 = por %p116, %p117
      %p119 = scmp.ne.s32.totalorder %s105, %s106
      %p120 = scmp.eq.s32.totalorder %s23, 1
      %p121 = por %p119, %p120
      %p123 = scmp.ne.s32.totalorder %s106, %s122
      %p124 = scmp.eq.s32.totalorder %s23, 0
      %p125 = por %p123, %p124
      %s126 = ssub.s32 %s25, %s39
      %s127 = ssub.s32 %s26, %s35
      %s128 = sor.u32 %s126, %s127
      %p129 = scmp.eq.s32.totalorder %s128, 0
      %s131 = sadd.s32 %s130, 1
      %s132 = scalar_select %p129, %s130, %s131
      %p135 = pneg %p129
      %p136 = scmp.eq.s32.totalorder %s17, 1
      %p137 = por %p135, %p136
      %p138 = scmp.ne.s32.totalorder %s130, %s133
      %p139 = scmp.eq.s32.totalorder %s17, 0
      %p140 = por %p138, %p139
      %p141 = scmp.ne.s32.totalorder %s130, %s133
      %p142 = scmp.eq.s32.totalorder %s22, 1
      %p143 = por %p141, %p142
      %p144 = scmp.ne.s32.totalorder %s133, %s134
      %p145 = scmp.eq.s32.totalorder %s22, 0
      %p146 = por %p144, %p145
      %p147 = scmp.ne.s32.totalorder %s133, %s134
      %p148 = scmp.eq.s32.totalorder %s23, 1
      %p149 = por %p147, %p148
      %p151 = scmp.ne.s32.totalorder %s134, %s150
      %p152 = scmp.eq.s32.totalorder %s23, 0
      %p153 = por %p151, %p152
      %s154 = ssub.s32 %s25, %s39
      %p155 = scmp.eq.s32.totalorder %s154, 0
      %s157 = sadd.s32 %s156, 1
      %s158 = scalar_select %p155, %s156, %s157
      %p161 = pneg %p155
      %p162 = scmp.eq.s32.totalorder %s17, 1
      %p163 = por %p161, %p162
      %p164 = scmp.ne.s32.totalorder %s156, %s159
      %p165 = scmp.eq.s32.totalorder %s17, 0
      %p166 = por %p164, %p165
      %p167 = scmp.ne.s32.totalorder %s156, %s159
      %p168 = scmp.eq.s32.totalorder %s22, 1
      %p169 = por %p167, %p168
      %p170 = scmp.ne.s32.totalorder %s159, %s160
      %p171 = scmp.eq.s32.totalorder %s22, 0
      %p172 = por %p170, %p171
      %p173 = scmp.ne.s32.totalorder %s159, %s160
      %p174 = scmp.eq.s32.totalorder %s23, 1
      %p175 = por %p173, %p174
      %p177 = scmp.ne.s32.totalorder %s160, %s176
      %p178 = scmp.eq.s32.totalorder %s23, 0
      %p179 = por %p177, %p178
      %s180 = ssub.s32 %s24, %s43
      %p181 = scmp.eq.s32.totalorder %s180, 0
      %s183 = sadd.s32 %s182, 1
      %s184 = scalar_select %p181, %s182, %s183
      %p187 = pneg %p181
      %p188 = scmp.eq.s32.totalorder %s17, 1
      %p189 = por %p187, %p188
      %p190 = scmp.ne.s32.totalorder %s182, %s185
      %p191 = scmp.eq.s32.totalorder %s17, 0
      %p192 = por %p190, %p191
      %p193 = scmp.ne.s32.totalorder %s182, %s185
      %p194 = scmp.eq.s32.totalorder %s22, 1
      %p195 = por %p193, %p194
      %p196 = scmp.ne.s32.totalorder %s185, %s186
      %p197 = scmp.eq.s32.totalorder %s22, 0
      %p198 = por %p196, %p197
      %p199 = scmp.ne.s32.totalorder %s185, %s186
      %p200 = scmp.eq.s32.totalorder %s23, 1
      %p201 = por %p199, %p200
      %p203 = scmp.ne.s32.totalorder %s186, %s202
      %p204 = scmp.eq.s32.totalorder %s23, 0
      %p205 = por %p203, %p204
      %p206 = scmp.le.s32.totalorder 1, %s17
      %p207 = scmp.lt.s32.totalorder %s17, 3
      %p208 = pnand %p206, %p207
      %p209 = pneg %p208
      // Predicated region
      $region9: #{mlp_forward.1} parent=5 // pred_check
        _
      $region10: #{mlp_forward.1} parent=5 // pred_check_branch
        %211 = sbr.rel (%p208) target = $region12
      $region11: #{mlp_forward.1} parent=5 // pred_region
        %s212 = ssub.s32 %s17, 1
        // Predicated region
        $region13: #{mlp_forward.1} parent=11 // pred_check
          %p213 = pneg %p62
        $region14: #{mlp_forward.1} parent=11 // pred_check_branch
          %215 = sbr.rel (%p213) target = $region16
        $region15: #{mlp_forward.1} parent=11 // pred_region
          %s216 = smul.u32 2, %s27
          %p217 = scmp.lt.s32.totalorder %s216, 1
          %s218 = scalar_select %p217, %s216, 1
          %s219 = smul.addr %s218, 4
          %s220 = scalar_lea.vmem %s0, %s219
          %s221 = smul.u32 2, %s27
        $region16: #{mlp_forward.1} parent=11 // pred_fallthru
          _
      $region12: #{mlp_forward.1} parent=5 // pred_fallthru
        _
      %p222 = scmp.lt.s32.totalorder %s17, 2
      // Predicated region
      $region17: #{mlp_forward.1} parent=5 // pred_check
        %p223 = pneg %p222
      $region18: #{mlp_forward.1} parent=5 // pred_check_branch
        %225 = sbr.rel (%p223) target = $region20
      $region19: #{mlp_forward.1} parent=5 // pred_region
        // Predicated region
        $region21: #{mlp_forward.1} parent=19 // pred_check
          %p226 = pneg %p84
        $region22: #{mlp_forward.1} parent=19 // pred_check_branch
          %228 = sbr.rel (%p226) target = $region24
        $region23: #{mlp_forward.1} parent=19 // pred_region
          %s229 = sand.u32 %s74, 1
          %s230 = scalar_lea.sflag [#allocation5], %s229
          %s231 = sand.u32 %s74, 1
          %s232 = smul.addr %s231, 64
          %s233 = scalar_lea.vmem [#allocation4], %s232
          %s235 = ssub.s32 1024, 1024
          %236 = vsyncadd %s230, %s235
          %s237 = smul.addr %s25, 16
          %s238 = sadd.s32 %s26, %s237
          %s239 = smul.addr %s238, 64
          %s240 = scalar_lea.hbm %s1, %s239
          %s241 = sshll.u32 %s233, 4
          %s242 = int_to_ptr.vmem [resolvable:$true] %s241
          %247 = dma.hbm_to_vmem [thread:$0]  %s240, 1024, %s242, %s230, 64, 64, 4
        $region24: #{mlp_forward.1} parent=19 // pred_fallthru
          _
        // Predicated region
        $region25: #{mlp_forward.1} parent=19 // pred_check
          %p248 = pneg %p112
        $region26: #{mlp_forward.1} parent=19 // pred_check_branch
          %250 = sbr.rel (%p248) target = $region28
        $region27: #{mlp_forward.1} parent=19 // pred_region
          %p251 = scmp.lt.s32.totalorder %s25, 1
          %s252 = scalar_select %p251, %s25, 1
          %p253 = scmp.lt.s32.totalorder %s26, 0
          %s254 = scalar_select %p253, %s26, 0
          %s255 = sadd.s32 %s254, %s252
          %s256 = scalar_lea.vmem %s2, %s255
        $region28: #{mlp_forward.1} parent=19 // pred_fallthru
          _
        // Predicated region
        $region29: #{mlp_forward.1} parent=19 // pred_check
          %p257 = pneg %p140
        $region30: #{mlp_forward.1} parent=19 // pred_check_branch
          %259 = sbr.rel (%p257) target = $region32
        $region31: #{mlp_forward.1} parent=19 // pred_region
          %s260 = sand.u32 %s130, 1
          %s261 = scalar_lea.sflag [#allocation7], %s260
          %s262 = sand.u32 %s130, 1
          %s263 = smul.addr %s262, 64
          %s264 = scalar_lea.vmem [#allocation6], %s263
          %s265 = smul.u32 16, %s26
          %s267 = ssub.s32 1024, 1024
          %268 = vsyncadd %s261, %s267
          %s269 = smul.addr %s25, 16
          %s270 = sadd.s32 %s265, %s269
          %s271 = smul.addr %s270, 64
          %s272 = scalar_lea.hbm %s3, %s271
          %s273 = sshll.u32 %s264, 4
          %s274 = int_to_ptr.vmem [resolvable:$true] %s273
          %279 = dma.hbm_to_vmem [thread:$0]  %s272, 1024, %s274, %s261, 64, 64, 4
        $region32: #{mlp_forward.1} parent=19 // pred_fallthru
          _
        // Predicated region
        $region33: #{mlp_forward.1} parent=19 // pred_check
          %p280 = pneg %p166
        $region34: #{mlp_forward.1} parent=19 // pred_check_branch
          %282 = sbr.rel (%p280) target = $region36
        $region35: #{mlp_forward.1} parent=19 // pred_region
          %p283 = scmp.lt.s32.totalorder %s25, 1
          %s284 = scalar_select %p283, %s25, 1
          %s285 = smul.addr %s284, 8
          %s286 = scalar_lea.vmem %s4, %s285
        $region36: #{mlp_forward.1} parent=19 // pred_fallthru
          _
      $region20: #{mlp_forward.1} parent=5 // pred_fallthru
        _
      %p287 = scmp.le.s32.totalorder 1, %s17
      %p288 = scmp.lt.s32.totalorder %s17, 3
      %p289 = pnand %p287, %p288
      %p290 = pneg %p289
      // Predicated region
      $region37: #{mlp_forward.1} parent=5 // pred_check
        _
      $region38: #{mlp_forward.1} parent=5 // pred_check_branch
        %292 = sbr.rel (%p289) target = $region40
      $region39: #{mlp_forward.1} parent=5 // pred_region
        %s293 = ssub.s32 %s17, 1
        %s294 = sand.u32 %s77, 1
        %s295 = scalar_lea.sflag [#allocation5], %s294
        %s296 = sand.u32 %s77, 1
        %s297 = smul.addr %s296, 64
        %s298 = scalar_lea.vmem [#allocation4], %s297
        // Predicated region
        $region41: #{mlp_forward.1} parent=39 // pred_check
          %p299 = pneg %p90
        $region42: #{mlp_forward.1} parent=39 // pred_check_branch
          %301 = sbr.rel (%p299) target = $region44
        $region43: #{mlp_forward.1} parent=39 // pred_region
          %302 = dma.done %s295, 1024
        $region44: #{mlp_forward.1} parent=39 // pred_fallthru
          _
        %s303 = sand.u32 %s133, 1
        %s304 = scalar_lea.sflag [#allocation7], %s303
        %s305 = sand.u32 %s133, 1
        %s306 = smul.addr %s305, 64
        %s307 = scalar_lea.vmem [#allocation6], %s306
        // Predicated region
        $region45: #{mlp_forward.1} parent=39 // pred_check
          %p308 = pneg %p146
        $region46: #{mlp_forward.1} parent=39 // pred_check_branch
          %310 = sbr.rel (%p308) target = $region48
        $region47: #{mlp_forward.1} parent=39 // pred_region
          %311 = dma.done %s304, 1024
        $region48: #{mlp_forward.1} parent=39 // pred_fallthru
          _
        %s312 = smul.u32 2, %s27
        %p313 = scmp.lt.s32.totalorder %s312, 1
        %s314 = scalar_select %p313, %s312, 1
        %s315 = smul.addr %s314, 4
        %s316 = scalar_lea.vmem %s0, %s315
        %p317 = pneg %p62
        %p318 = pneg %p59
        %s319 = sand.u32 %s77, 1
        %s320 = scalar_lea.sflag [#allocation5], %s319
        %s321 = sand.u32 %s77, 1
        %s322 = smul.addr %s321, 64
        %s323 = scalar_lea.vmem [#allocation4], %s322
        %p324 = pneg %p90
        %p325 = pneg %p87
        %p326 = scmp.lt.s32.totalorder %s28, 1
        %s327 = scalar_select %p326, %s28, 1
        %p328 = scmp.lt.s32.totalorder %s29, 0
        %s329 = scalar_select %p328, %s29, 0
        %s330 = sadd.s32 %s329, %s327
        %s331 = scalar_lea.vmem %s2, %s330
        %p332 = pneg %p118
        %p333 = pneg %p115
        %s334 = sand.u32 %s133, 1
        %s335 = scalar_lea.sflag [#allocation7], %s334
        %s336 = sand.u32 %s133, 1
        %s337 = smul.addr %s336, 64
        %s338 = scalar_lea.vmem [#allocation6], %s337
        %p339 = pneg %p146
        %p340 = pneg %p143
        %p341 = scmp.lt.s32.totalorder %s28, 1
        %s342 = scalar_select %p341, %s28, 1
        %s343 = smul.addr %s342, 8
        %s344 = scalar_lea.vmem %s4, %s343
        %p345 = pneg %p172
        %p346 = pneg %p169
        %p347 = pneg %p198
        %p348 = pneg %p195
        %s349 = smul.u32 2, %s27
        %p350 = scmp.lt.s32.totalorder %s349, 1
        %s351 = scalar_select %p350, %s349, 1
        %s352 = smul.addr %s351, 8
        %s353 = scalar_lea.vmem %s5, %s352
        %s354 = smul.u32 2, %s27
        %p355 = scmp.lt.s32.totalorder %s354, 1
        %s356 = scalar_select %p355, %s354, 1
        %s357 = smul.addr %s356, 4
        %s358 = scalar_lea.vmem %s0, %s357
        %s359 = smul.u32 2, %s27
        %p360 = scmp.lt.s32.totalorder %s28, 1
        %s361 = scalar_select %p360, %s28, 1
        %p362 = scmp.lt.s32.totalorder %s29, 0
        %s363 = scalar_select %p362, %s29, 0
        %s364 = sadd.s32 %s363, %s361
        %s365 = scalar_lea.vmem %s2, %s364
        %s366 = smul.u32 16, %s29
        %p367 = scmp.lt.s32.totalorder %s28, 1
        %s368 = scalar_select %p367, %s28, 1
        %s369 = smul.addr %s368, 8
        %s370 = scalar_lea.vmem %s4, %s369
        %s371 = smul.u32 2, %s27
        %p372 = scmp.lt.s32.totalorder %s371, 1
        %s373 = scalar_select %p372, %s371, 1
        %s374 = smul.addr %s373, 8
        %s375 = scalar_lea.vmem %s5, %s374
        %s376 = smul.u32 2, %s27
        %p378 = scmp.eq.s32.totalorder %s28, 0
        %p379 = scmp.eq.s32.totalorder %s29, 0
        %p380 = pnand %p378, %p379
        %p381 = pneg %p380
        // Predicated region
        $region49: #{mlp_forward.1} parent=39 // pred_check
          _
        $region50: #{mlp_forward.1} parent=39 // pred_check_branch
          %383 = sbr.rel (%p380) target = $region52
        $region51: #{mlp_forward.1} parent=39 // pred_region
          %v384 = vld [vmem:[%s358] sm:$0xf]
          %v385 = vld [vmem:[%s358 + $0x4] sm:$0xf]
          %v386 = vunpack.c.l.bf16 %v384
          %v387 = vunpack.c.l.bf16 %v385
          %388 = vst [vmem:[#allocation2] sm:$0xff] %v386
          %389 = vst [vmem:[#allocation2 + $0x8] sm:$0xff] %v387
        $region52: #{mlp_forward.1} parent=39 // pred_fallthru
          _
        // Predicated region
        $region53: #{mlp_forward.1} parent=39 // pred_check
          %p390 = pneg %p379
        $region54: #{mlp_forward.1} parent=39 // pred_check_branch
          %392 = sbr.rel (%p390) target = $region56
        $region55: #{mlp_forward.1} parent=39 // pred_region
          %393 = vst [vmem:[#allocation3] sm:$0xff] 0.0
          %394 = vst [vmem:[#allocation3 + $0x8] sm:$0xff] 0.0
        $region56: #{mlp_forward.1} parent=39 // pred_fallthru
          _
        %v395 = vld [vmem:[#allocation2] sm:$0xff]
        %v396 = vld [vmem:[#allocation2 + $0x8] sm:$0xff]
        %v397 = vpack.c.bf16 %v396, %v395
        %v398 = vld [vmem:[%s298] sm:$0xf]
        %v399 = vld [vmem:[%s298 + $0x4] sm:$0xf]
        %v400 = vld [vmem:[%s298 + $0x8] sm:$0xf]
        %v401 = vld [vmem:[%s298 + $0xc] sm:$0xf]
        %v402 = vld [vmem:[%s298 + $0x10] sm:$0xf]
        %v403 = vld [vmem:[%s298 + $0x14] sm:$0xf]
        %v404 = vld [vmem:[%s298 + $0x18] sm:$0xf]
        %v405 = vld [vmem:[%s298 + $0x1c] sm:$0xf]
        %v406 = vld [vmem:[%s298 + $0x20] sm:$0xf]
        %v407 = vld [vmem:[%s298 + $0x24] sm:$0xf]
        %v408 = vld [vmem:[%s298 + $0x28] sm:$0xf]
        %v409 = vld [vmem:[%s298 + $0x2c] sm:$0xf]
        %v410 = vld [vmem:[%s298 + $0x30] sm:$0xf]
        %v411 = vld [vmem:[%s298 + $0x34] sm:$0xf]
        %v412 = vld [vmem:[%s298 + $0x38] sm:$0xf]
        %v413 = vld [vmem:[%s298 + $0x3c] sm:$0xf]
        %v414 = vld [vmem:[%s365] sm:$0x1]
        %v416 = vlaneseq
        %v417 = vshrl.u32 %v416, 7
        %v418 = vsub.s32 0, %v417
        %v419 = vrot.slane %v414, %v418
        %v437 = vunpack.c.l.b16 %v398
        %v438 = vunpack.c.l.b16 %v399
        %v439 = vunpack.c.l.b16 %v400
        %v440 = vunpack.c.l.b16 %v401
        %v441 = vunpack.c.l.b16 %v402
        %v442 = vunpack.c.l.b16 %v403
        %v443 = vunpack.c.l.b16 %v404
        %v444 = vunpack.c.l.b16 %v405
        %v445 = vunpack.c.l.b16 %v406
        %v446 = vunpack.c.l.b16 %v407
        %v447 = vunpack.c.l.b16 %v408
        %v448 = vunpack.c.l.b16 %v409
        %v449 = vunpack.c.l.b16 %v410
        %v450 = vunpack.c.l.b16 %v411
        %v451 = vunpack.c.l.b16 %v412
        %v452 = vunpack.c.l.b16 %v413
        %v453 = vpack.c.b16 %v438, %v437
        %v454 = vpack.c.b16 %v440, %v439
        %v455 = vpack.c.b16 %v442, %v441
        %v456 = vpack.c.b16 %v444, %v443
        %v457 = vpack.c.b16 %v446, %v445
        %v458 = vpack.c.b16 %v448, %v447
        %v459 = vpack.c.b16 %v450, %v449
        %v460 = vpack.c.b16 %v452, %v451
        %469 = vmatprep.subr.bf16.mxu0 0
        %470 = vmatpush1.bf16.msra.mxu0 %v453
        %471 = vmatprep.subr.bf16.mxu0 0
        %472 = vmatpush1.bf16.msra.mxu0 %v454
        %473 = vmatprep.subr.bf16.mxu0 0
        %474 = vmatpush1.bf16.msra.mxu0 %v455
        %475 = vmatprep.subr.bf16.mxu0 0
        %476 = vmatpush1.bf16.msra.mxu0 %v456
        %477 = vmatprep.subr.bf16.mxu0 0
        %478 = vmatpush1.bf16.msra.mxu0 %v457
        %479 = vmatprep.subr.bf16.mxu0 0
        %480 = vmatpush1.bf16.msra.mxu0 %v458
        %481 = vmatprep.subr.bf16.mxu0 0
        %482 = vmatpush1.bf16.msra.mxu0 %v459
        %483 = vmatprep.subr.bf16.mxu0 0
        %484 = vmatpush1.bf16.msra.mxu0 %v460
        %485 = vmatprep.subr.bf16.mxu0 0
        %486 = vmatpush1.bf16.msra.mxu0 0
        %487 = vmatprep.subr.bf16.mxu0 0
        %488 = vmatpush1.bf16.msra.mxu0 0
        %489 = vmatprep.subr.bf16.mxu0 0
        %490 = vmatpush1.bf16.msra.mxu0 0
        %491 = vmatprep.subr.bf16.mxu0 0
        %492 = vmatpush1.bf16.msra.mxu0 0
        %493 = vmatprep.subr.bf16.mxu0 0
        %494 = vmatpush1.bf16.msra.mxu0 0
        %495 = vmatprep.subr.bf16.mxu0 0
        %496 = vmatpush1.bf16.msra.mxu0 0
        %497 = vmatprep.subr.bf16.mxu0 0
        %498 = vmatpush1.bf16.msra.mxu0 0
        %499 = vmatprep.subr.bf16.mxu0 0
        %500 = vmatpush1.bf16.msra.mxu0 0
        %501 = vmatprep.mubr.bf16.mxu0 0
        %502 = vmatmul.mubr.bf16.gmra.mrb[0].mxu0 %v397
        %v503 = vpop.f32.mrb[0].mxu0
        %v504 = vadd.f32 %v419, %v503
        %v505 = vpop.f32.mrb[0].mxu0
        %v506 = vpop.f32.mrb[0].mxu0
        %v507 = vadd.f32 %v419, %v506
        %v508 = vpop.f32.mrb[0].mxu0
        %509 = vdwg.mxu0
        %v510 = vmul.f32 %v504, 0.5
        %v511 = vmul.f32 %v507, 0.5
        %v512 = vmul.f32 %v504, 0.70710677
        %v513 = vmul.f32 %v507, 0.70710677
        %v514 = verf.f32.pop %v512
        %v515 = verf.f32.pop %v513
        %v516 = vadd.f32 %v514, 1.0
        %v517 = vadd.f32 %v515, 1.0
        %v518 = vmul.f32 %v510, %v516
        %v519 = vmul.f32 %v511, %v517
        %v520 = vld [vmem:[#allocation3] sm:$0xff]
        %v521 = vld [vmem:[#allocation3 + $0x8] sm:$0xff]
        %v522 = vpack.c.bf16 %v519, %v518
        %v523 = vld [vmem:[%s307] sm:$0xf]
        %v524 = vld [vmem:[%s307 + $0x4] sm:$0xf]
        %v525 = vld [vmem:[%s307 + $0x8] sm:$0xf]
        %v526 = vld [vmem:[%s307 + $0xc] sm:$0xf]
        %v527 = vld [vmem:[%s307 + $0x10] sm:$0xf]
        %v528 = vld [vmem:[%s307 + $0x14] sm:$0xf]
        %v529 = vld [vmem:[%s307 + $0x18] sm:$0xf]
        %v530 = vld [vmem:[%s307 + $0x1c] sm:$0xf]
        %v531 = vld [vmem:[%s307 + $0x20] sm:$0xf]
        %v532 = vld [vmem:[%s307 + $0x24] sm:$0xf]
        %v533 = vld [vmem:[%s307 + $0x28] sm:$0xf]
        %v534 = vld [vmem:[%s307 + $0x2c] sm:$0xf]
        %v535 = vld [vmem:[%s307 + $0x30] sm:$0xf]
        %v536 = vld [vmem:[%s307 + $0x34] sm:$0xf]
        %v537 = vld [vmem:[%s307 + $0x38] sm:$0xf]
        %v538 = vld [vmem:[%s307 + $0x3c] sm:$0xf]
        %v555 = vunpack.c.l.b16 %v523
        %v556 = vunpack.c.l.b16 %v524
        %v557 = vunpack.c.l.b16 %v525
        %v558 = vunpack.c.l.b16 %v526
        %v559 = vunpack.c.l.b16 %v527
        %v560 = vunpack.c.l.b16 %v528
        %v561 = vunpack.c.l.b16 %v529
        %v562 = vunpack.c.l.b16 %v530
        %v563 = vunpack.c.l.b16 %v531
        %v564 = vunpack.c.l.b16 %v532
        %v565 = vunpack.c.l.b16 %v533
        %v566 = vunpack.c.l.b16 %v534
        %v567 = vunpack.c.l.b16 %v535
        %v568 = vunpack.c.l.b16 %v536
        %v569 = vunpack.c.l.b16 %v537
        %v570 = vunpack.c.l.b16 %v538
        %v571 = vpack.c.b16 %v556, %v555
        %v572 = vpack.c.b16 %v558, %v557
        %v573 = vpack.c.b16 %v560, %v559
        %v574 = vpack.c.b16 %v562, %v561
        %v575 = vpack.c.b16 %v564, %v563
        %v576 = vpack.c.b16 %v566, %v565
        %v577 = vpack.c.b16 %v568, %v567
        %v578 = vpack.c.b16 %v570, %v569
        %587 = vmatprep.subr.bf16.mxu0 0
        %588 = vmatpush1.bf16.msra.mxu0 %v571
        %589 = vmatprep.subr.bf16.mxu0 0
        %590 = vmatpush1.bf16.msra.mxu0 %v572
        %591 = vmatprep.subr.bf16.mxu0 0
        %592 = vmatpush1.bf16.msra.mxu0 %v573
        %593 = vmatprep.subr.bf16.mxu0 0
        %594 = vmatpush1.bf16.msra.mxu0 %v574
        %595 = vmatprep.subr.bf16.mxu0 0
        %596 = vmatpush1.bf16.msra.mxu0 %v575
        %597 = vmatprep.subr.bf16.mxu0 0
        %598 = vmatpush1.bf16.msra.mxu0 %v576
        %599 = vmatprep.subr.bf16.mxu0 0
        %600 = vmatpush1.bf16.msra.mxu0 %v577
        %601 = vmatprep.subr.bf16.mxu0 0
        %602 = vmatpush1.bf16.msra.mxu0 %v578
        %603 = vmatprep.subr.bf16.mxu0 0
        %604 = vmatpush1.bf16.msra.mxu0 0
        %605 = vmatprep.subr.bf16.mxu0 0
        %606 = vmatpush1.bf16.msra.mxu0 0
        %607 = vmatprep.subr.bf16.mxu0 0
        %608 = vmatpush1.bf16.msra.mxu0 0
        %609 = vmatprep.subr.bf16.mxu0 0
        %610 = vmatpush1.bf16.msra.mxu0 0
        %611 = vmatprep.subr.bf16.mxu0 0
        %612 = vmatpush1.bf16.msra.mxu0 0
        %613 = vmatprep.subr.bf16.mxu0 0
        %614 = vmatpush1.bf16.msra.mxu0 0
        %615 = vmatprep.subr.bf16.mxu0 0
        %616 = vmatpush1.bf16.msra.mxu0 0
        %617 = vmatprep.subr.bf16.mxu0 0
        %618 = vmatpush1.bf16.msra.mxu0 0
        %619 = vmatprep.mubr.bf16.mxu0 0
        %620 = vmatmul.mubr.bf16.gmra.mrb[0].mxu0 %v522
        %v621 = vpop.f32.mrb[0].mxu0
        %v622 = vadd.f32 0.0, %v621
        %v623 = vpop.f32.mrb[0].mxu0
        %v624 = vpop.f32.mrb[0].mxu0
        %v625 = vadd.f32 0.0, %v624
        %v626 = vpop.f32.mrb[0].mxu0
        %627 = vdwg.mxu0
        %v628 = vadd.f32 %v520, %v622
        %v629 = vadd.f32 %v521, %v625
        %630 = vst [vmem:[#allocation3] sm:$0xff] %v628
        %631 = vst [vmem:[#allocation3 + $0x8] sm:$0xff] %v629
        // Predicated region
        $region57: #{mlp_forward.1} parent=39 // pred_check
          %p632 = pneg %p379
        $region58: #{mlp_forward.1} parent=39 // pred_check_branch
          %634 = sbr.rel (%p632) target = $region60
        $region59: #{mlp_forward.1} parent=39 // pred_region
          %v635 = vld [vmem:[%s370] sm:$0xff]
          %v636 = vld [vmem:[#allocation3] sm:$0xff]
          %v637 = vld [vmem:[#allocation3 + $0x8] sm:$0xff]
          %v638 = vlaneseq
          %v639 = vshrl.u32 %v638, 7
          %v640 = vsub.s32 0, %v639
          %v641 = vrot.slane %v635, %v640
          %v642 = vadd.f32 %v636, %v641
          %v643 = vadd.f32 %v637, %v641
          %v644 = vld [vmem:[#allocation2] sm:$0xff]
          %v645 = vld [vmem:[#allocation2 + $0x8] sm:$0xff]
          %v646 = vadd.f32 %v642, %v644
          %v647 = vadd.f32 %v643, %v645
          %648 = vadd.xlane.f32.xlu0 %v646
          %v649 = vpop.xlane.xlu0 %648
          %650 = vadd.xlane.f32.xlu0 %v647
          %v651 = vpop.xlane.xlu0 %650
          %v652 = vmul.f32 %v649, 0.03125
          %v653 = vmul.f32 %v651, 0.03125
          %v654 = vsub.f32 %v646, %v652
          %v655 = vsub.f32 %v647, %v653
          %v656 = vlaneseq
          %v657 = vand.u32 %v656, 127
          %vm658 = vcmp.lt.s32.totalorder %v657, 32
          %v659 = vsel %vm658, 1, 0
          %vm660 = vcmp.eq.s32.totalorder %v659, 1
          %v661 = vsel %vm660, %v654, 0.0
          %v662 = vsel %vm660, %v655, 0.0
          %v663 = vmul.f32 %v661, %v661
          %v664 = vmul.f32 %v662, %v662
          %665 = vadd.xlane.f32.xlu0 %v663
          %v666 = vpop.xlane.xlu0 %665
          %667 = vadd.xlane.f32.xlu0 %v664
          %v668 = vpop.xlane.xlu0 %667
          %v669 = vmul.f32 %v666, 0.03125
          %v670 = vmul.f32 %v668, 0.03125
          %v671 = vadd.f32 %v669, 1e-12
          %v672 = vadd.f32 %v670, 1e-12
          %v673 = vrsqrt.pop %v671
          %v674 = vrsqrt.pop %v672
          %v675 = vmul.f32 %v654, %v673
          %v676 = vmul.f32 %v655, %v674
          %v677 = vlaneseq
          %v678 = vshrl.u32 %v677, 7
          %v679 = vsub.s32 1, %v678
          %v680 = vrot.slane %v635, %v679
          %v681 = vmul.f32 %v675, %v680
          %v682 = vmul.f32 %v676, %v680
          %v683 = vlaneseq
          %v684 = vshrl.u32 %v683, 7
          %v685 = vsub.s32 2, %v684
          %v686 = vrot.slane %v635, %v685
          %v687 = vadd.f32 %v681, %v686
          %v688 = vadd.f32 %v682, %v686
          %689 = vst [vmem:[#allocation2] sm:$0xff] %v687
          %690 = vst [vmem:[#allocation2 + $0x8] sm:$0xff] %v688
        $region60: #{mlp_forward.1} parent=39 // pred_fallthru
          _
        %p691 = scmp.eq.s32.totalorder %s28, 1
        %p692 = pnand %p379, %p691
        %p693 = pneg %p692
        // Predicated region
        $region61: #{mlp_forward.1} parent=39 // pred_check
          _
        $region62: #{mlp_forward.1} parent=39 // pred_check_branch
          %695 = sbr.rel (%p692) target = $region64
        $region63: #{mlp_forward.1} parent=39 // pred_region
          %v696 = vld [vmem:[%s370] sm:$0xff]
          %v697 = vld [vmem:[#allocation2] sm:$0xff]
          %v698 = vld [vmem:[#allocation2 + $0x8] sm:$0xff]
          %v699 = vlaneseq
          %v700 = vshrl.u32 %v699, 7
          %v701 = vsub.s32 2, %v700
          %v702 = vrot.slane %v696, %v701
          %v703 = vsub.f32 %v697, %v702
          %v704 = vsub.f32 %v698, %v702
          %v705 = vlaneseq
          %v706 = vshrl.u32 %v705, 7
          %v707 = vsub.s32 3, %v706
          %v708 = vrot.slane %v696, %v707
          %v709 = vmul.f32 %v703, %v708
          %v710 = vmul.f32 %v704, %v708
          %711 = vst [vmem:[%s375] sm:$0xff] %v709
          %712 = vst [vmem:[%s375 + $0x8] sm:$0xff] %v710
        $region64: #{mlp_forward.1} parent=39 // pred_fallthru
          _
        %s713 = smul.u32 2, %s27
        %p714 = scmp.lt.s32.totalorder %s713, 1
        %s715 = scalar_select %p714, %s713, 1
        %s716 = smul.addr %s715, 8
        %s717 = scalar_lea.vmem %s5, %s716
        // Predicated region
        $region65: #{mlp_forward.1} parent=39 // pred_check
          %p718 = pneg %p195
        $region66: #{mlp_forward.1} parent=39 // pred_check_branch
          %720 = sbr.rel (%p718) target = $region68
        $region67: #{mlp_forward.1} parent=39 // pred_region
          %s721 = smul.u32 2, %s27
        $region68: #{mlp_forward.1} parent=39 // pred_fallthru
          _
        // Predicated region
        $region69: #{mlp_forward.1} parent=39 // pred_check
          %p722 = pneg %p195
        $region70: #{mlp_forward.1} parent=39 // pred_check_branch
          %724 = sbr.rel (%p722) target = $region72
        $region71: #{mlp_forward.1} parent=39 // pred_region
          %s725 = smul.u32 2, %s27
          %p726 = scmp.lt.s32.totalorder %s725, 1
          %s727 = scalar_select %p726, %s725, 1
          %s728 = smul.addr %s727, 8
          %s729 = scalar_lea.vmem %s5, %s728
        $region72: #{mlp_forward.1} parent=39 // pred_fallthru
          _
      $region40: #{mlp_forward.1} parent=5 // pred_fallthru
        _
      %p730 = scmp.le.s32.totalorder 2, %s17
      // Predicated region
      $region73: #{mlp_forward.1} parent=5 // pred_check
        %p731 = pneg %p730
      $region74: #{mlp_forward.1} parent=5 // pred_check_branch
        %733 = sbr.rel (%p731) target = $region76
      $region75: #{mlp_forward.1} parent=5 // pred_region
        %s734 = ssub.s32 %s17, 2
      $region76: #{mlp_forward.1} parent=5 // pred_fallthru
        _
    $region6: #{mlp_forward.1} parent=1 // loop_footer
      %s21 = sadd.s32 1, %s17
    $region7: #{mlp_forward.1} parent=1 // loop_footer_branch
      %16 = sbr.rel target = $region3
    $region8: #{mlp_forward.1} parent=1 // loop_exit
      _
    %735 = vsyncpa [#allocation5], 1
    %s736 = scalar_lea.sflag [#allocation5], 1
    %737 = vsyncpa %s736, 1
    %738 = vsyncpa [#allocation7], 1
    %s739 = scalar_lea.sflag [#allocation7], 1
    %740 = vsyncpa %s739, 1

</llo_original>
